<compile_context>
chip_gen: v5e
topology: v5e:2x2
jax: 0.10.0
libtpu: 0.0.40
codegen_flags: <defaults>
</compile_context>

<pallas_src>
import math

import jax
import jax.numpy as jnp
from jax.experimental import pallas as pl
from jax.experimental.pallas import tpu as pltpu


def _dma_copy_kernel(x_hbm, o_hbm, sem):
    # One contiguous HBM->HBM DMA of the entire buffer.  The DMA engine streams
    # at HBM bandwidth with no VMEM budget and no vector-unit work.
    # TODO(synk): on v7x, two half-buffer DMAs (one per TensorCore via core_map)
    # would halve per-core descriptor overhead, but a single DMA already
    # saturates the shared HBM bandwidth, so we keep the simple form.
    cp = pltpu.make_async_copy(x_hbm, o_hbm, sem)
    cp.start()
    cp.wait()


def _materialized_view(x2d):
    """Explicit fresh-HBM-buffer copy of the (rows, 128) view via one DMA."""
    rows, lane = x2d.shape
    itemsize = jnp.dtype(x2d.dtype).itemsize
    total_bytes = rows * lane * itemsize
    return pl.pallas_call(
        _dma_copy_kernel,
        out_shape=jax.ShapeDtypeStruct((rows, lane), x2d.dtype),
        in_specs=[pl.BlockSpec(memory_space=pl.ANY)],   # raw HBM ref, no auto-DMA
        out_specs=pl.BlockSpec(memory_space=pl.ANY),    # raw HBM ref, written by DMA
        scratch_shapes=[pltpu.SemaphoreType.DMA(())],
        # Pure-bandwidth op: zero flops, read + write the whole buffer once.
        cost_estimate=pl.CostEstimate(
            flops=0, transcendentals=0, bytes_accessed=2 * total_bytes),
    )(x2d)


def test_ops_forward(x, materialize=False):
    """Equivalent of TestOps.forward: x.view(-1, 128)."""
    total = math.prod(x.shape)
    assert total % 128 == 0, "total elements must be divisible by 128"
    rows = total // 128

    # FAST PATH: .view is metadata-only -> no kernel, no data movement.
    if not materialize:
        return jnp.reshape(x, (rows, 128))

    # MATERIALIZATION PATH: metadata-only reshape to the 2-D view, then a
    # single HBM->HBM DMA into a fresh output buffer.
    x2d = jnp.reshape(x, (rows, 128))
    return _materialized_view(x2d)


if __name__ == "__main__":
    key = jax.random.PRNGKey(0)
    # Small NCHW input: 2*4*16*16 = 2048 elements -> view(-1, 128) = (16, 128)
    x = jax.random.normal(key, (2, 4, 16, 16), dtype=jnp.float32)

    # Pure-JAX reference (torch's .view semantics: row-major reinterpretation).
    y_ref = jnp.reshape(x, (-1, 128))

    # Default fast path (no kernel, metadata-only).
    y_fast = jax.block_until_ready(test_ops_forward(x))
    assert y_fast.shape == (16, 128)
    assert jnp.array_equal(y_fast, y_ref)

    # Pallas materialization path: run the DMA kernel once and check it.
    y_kern = jax.block_until_ready(test_ops_forward(x, materialize=True))
    assert y_kern.shape == (16, 128)
    assert jnp.array_equal(y_kern, y_ref)

    print("KERNEL_OK")
</pallas_src>

<mosaic_0001>
module attributes {stable_mosaic.version = 11 : i64} {
  func.func @_dma_copy_kernel(%arg0: memref<16x128xf32, #tpu.memory_space<any>>, %arg1: memref<16x128xf32, #tpu.memory_space<any>>, %arg2: memref<!tpu.dma_semaphore, #tpu.memory_space<semaphore_mem>>) attributes {dimension_semantics = [], scalar_prefetch = 0 : i64, scratch_operands = 1 : i64, tpu.core_type = #tpu.core_type<tc>} {
    tpu.enqueue_dma source(%arg0 : memref<16x128xf32, #tpu.memory_space<any>>) target(%arg1 : memref<16x128xf32, #tpu.memory_space<any>>) target_semaphore(%arg2 : memref<!tpu.dma_semaphore, #tpu.memory_space<semaphore_mem>>)
    tpu.wait_dma2 semaphore(%arg2 : memref<!tpu.dma_semaphore, #tpu.memory_space<semaphore_mem>>) src(%arg0 : memref<16x128xf32, #tpu.memory_space<any>>) dst(%arg1 : memref<16x128xf32, #tpu.memory_space<any>>)
    return
  }
}

</mosaic_0001>

<llo_original>
// kernel: tpu_custom_call.1
$region0: #{tpu_custom_call.1}
  #allocation0 [shape = 'u32[]', space=smem, size = 0x4, offset = 0x4, fixed_abs, tag = 'smem constant byte address 0x4 - core index']
  #allocation1 [shape = 'u32[72,128]{1,0:T(1,128)}', space=vmem, size = 0x9000, scoped, tag = 'internal scratch']
  #allocation2 [shape = 's32[1]{0}', space=sflag, size = 0x4, scoped, tag = 'scratch operand']
  #allocation3 [shape = 's32[]', space=sflag, size = 0x4, offset = 0, fixed_abs, tag = 'sflag constant byte address 0x0 - dummy sync flag']
  #allocation4 [shape = 'u32[0]{0}', space=smem, size = 0, offset = 0, fixed_abs, tag = 'smem constant byte address 0x0 - null']
  %s0 = inlined_call_operand.hbm [shape: f32[16,128], index: 0, kind: input, shape index: {}]
  %s1 = inlined_call_operand.hbm [shape: f32[16,128], index: 1, kind: output, shape index: {}]
  %s2 = sld [smem:[#allocation0]]
  $region2: #{tpu_custom_call.1} parent=0
    _
  %s4 = ssub.s32 1, %s2
  %s5 = scalar_select 0, %s4, %s2
  %s7 = sshll.u32 1, 14
  %s8 = sxor.u32 4294967295, %s7
  %s10 = sshll.u32 %s0, 4
  %s11 = int_to_ptr.hbm [resolvable:$true] %s10
  %s12 = sshll.u32 %s1, 4
  %s13 = int_to_ptr.hbm [resolvable:$true] %s12
  %16 = dma.general %s11, 256, %s13, [#allocation2], [#allocation3], [#allocation4], 0, 0
  %s17 = smul.u32 16, 1
  %s18 = sshll.u32 %s17, 4
  %19 = dma.done [#allocation2], %s18
  %20 = vsyncmov [#allocation2]
  %s21 = vpop.sfrf %20
  %p22 = scmp.eq.s32.totalorder %s21, 0
  %p23 = pneg %p22
  %25 = shalt.err (%p23)

</llo_original>
